<compile_context>
chip_gen: v7x
topology: tpu7x:2x2x1
jax: 0.10.0
libtpu: 0.0.40
codegen_flags: <defaults>
</compile_context>

<pallas_src>
import functools

import jax
import jax.numpy as jnp
import numpy as np
from jax.experimental import pallas as pl
from jax.experimental.pallas import tpu as pltpu


def resblock_kernel(x_ref, w_ref, o_ref, *, Wp, H, W, Nb, d1_list, d2_list):
    # x_ref : (R, S)    packed image block, row r = channel*Nb + image
    # w_ref : (R, NCOL) VMEM weight/bias column tile (BN scales pre-folded)
    # o_ref : (R, S)    packed output block (wrapper un-stacks and crops)
    R, S = x_ref.shape
    nd1, nd2 = len(d1_list), len(d2_list)
    b1_j = 9 * nd1                 # bias1 column index
    c2_0 = b1_j + 1                # first conv2 column
    b2_j = c2_0 + 9 * nd2          # bias2 column index

    # Interior mask (1 inside the original HxW image, 0 on halo / lane tail),
    # built in-kernel from a lane iota.  f32 floor trick: (p + 0.5)/Wp is always
    # >= 0.5/Wp away from an integer, far above the ~3e-6 rounding error.
    lane = jax.lax.broadcasted_iota(jnp.int32, (1, S), 1).astype(jnp.float32)
    prow = jnp.floor((lane + 0.5) * (1.0 / Wp))
    pcol = lane - prow * Wp
    interior = (prow >= 1.0) & (prow <= H) & (pcol >= 1.0) & (pcol <= W)
    mask = jnp.where(interior, 1.0, 0.0).astype(jnp.float32)        # (1, S)

    # flattened offset of each 3x3 tap in the padded image
    offsets = [(dy - 1) * Wp + (dx - 1) for dy in range(3) for dx in range(3)]

    def col(j):                     # (R, 1) weight / bias column from VMEM
        return w_ref[:, j:j + 1]

    def shift_lane(v, k):           # v[r, p] -> v[r, p + k]   (tap shift, XLU)
        return v if k == 0 else pltpu.roll(v, shift=(-k) % S, axis=1)

    def shift_chan(v, d):           # row (c, n) -> row ((c + d) % C, n)  (XLU)
        return v if d == 0 else pltpu.roll(v, shift=(-(d * Nb)) % R, axis=0)

    x = x_ref[...]                                                   # (R, S)

    # ---- conv1 (3x3, SAME, dense; BN1 scale folded into weight columns) ----
    acc = jnp.zeros((R, S), jnp.float32)
    for t, k in enumerate(offsets):
        sh = shift_lane(x, k)
        for p, d in enumerate(d1_list):
            acc = acc + col(t * nd1 + p) * shift_chan(sh, d)
    # + bn1 bias, relu, zero the halo so conv2 sees SAME zero padding
    y1 = jnp.maximum(acc + col(b1_j), 0.0) * mask

    # ---- conv2 (3x3, SAME, grouped; depthwise when groups == channels) -----
    acc = jnp.zeros((R, S), jnp.float32)
    for t, k in enumerate(offsets):
        sh = shift_lane(y1, k)
        for p, d in enumerate(d2_list):
            acc = acc + col(c2_0 + t * nd2 + p) * shift_chan(sh, d)

    # + bn2 bias, identity residual (re-read x: short live range, vld has slack),
    # relu -> one unmasked stacked (R, S) store
    o_ref[...] = jnp.maximum(acc + col(b2_j) + x_ref[...], 0.0)


def enhanced_quant_residual_block(x_nchw, w1_hwio, w2_hwio_grp,
                                  scale1, bias1, scale2, bias2, groups):
    """x_nchw: (N,C,H,W) f32.  Returns (N,Ce,H,W) f32 (NCHW, like PyTorch)."""
    N, C, H, W = x_nchw.shape
    Ce = w1_hwio.shape[-1]
    assert Ce == C, "identity shortcut requires expansion == 1"
    cin_g = w2_hwio_grp.shape[2]
    cout_g = Ce // groups
    assert cin_g == Ce // groups

    Hp, Wp = H + 2, W + 2
    S0 = Hp * Wp
    S = ((S0 + 127) // 128) * 128          # lane-pad flattened spatial dim
    # roll-wraparound safety: no tap read from an interior pixel may wrap
    # around the lane axis (max interior flat index + max tap offset < S).
    assert H * Wp + W + (Wp + 1) < S

    # pack Nb images x C channels onto the 8 sublanes of a vreg
    Nb = max(1, 8 // C) if C <= 8 else 1
    R = Nb * C
    NBLK = -(-N // Nb)
    Npad = NBLK * Nb
    assert R % 8 == 0 or NBLK == 1, "sublane packing needs Nb*C % 8 == 0"

    # zero-halo pad, flatten spatial, lane-pad, stack (channel-major, image-minor)
    # TODO(synk): at large H*W move halo construction / final crop in-kernel to
    # avoid the extra HBM round trip of the padded tensors.
    xp = jnp.pad(x_nchw.astype(jnp.float32),
                 ((0, Npad - N), (0, 0), (1, 1), (1, 1))).reshape(Npad, C, S0)
    xp = jnp.pad(xp, ((0, 0), (0, 0), (0, S - S0)))
    x_stk = xp.reshape(NBLK, Nb, C, S).transpose(0, 2, 1, 3).reshape(NBLK * R, S)

    # ---- fold BN scales into the conv weights, build the weight-column tile --
    co_r = np.arange(R) // Nb                      # output channel of each row
    w1s = (w1_hwio.reshape(9, C, Ce) * scale1[None, None, :]).astype(jnp.float32)
    w2s = (w2_hwio_grp.reshape(9, cin_g, Ce) * scale2[None, None, :]).astype(jnp.float32)

    d1_list = list(range(C))                       # dense conv1: every channel offset
    d2_list = sorted({((co // cout_g) * cin_g + ci - co) % Ce
                      for co in range(Ce) for ci in range(cin_g)})

    def conv_cols(ws, d_list, g_cin, g_cout):
        # column j=(t, d); value at row r = ws[t, local_cin, co_r[r]] if input
        # channel (co_r[r] + d) % Ce lies inside co's group, else 0.
        n = 9 * len(d_list)
        t_idx = np.repeat(np.arange(9), len(d_list))
        d_idx = np.tile(np.asarray(d_list, dtype=np.int64), 9)
        CO = np.broadcast_to(co_r[None, :], (n, R))
        CIN = (CO + d_idx[:, None]) % Ce
        LO = (CO // g_cout) * g_cin
        VALID = ((CIN >= LO) & (CIN < LO + g_cin)).astype(np.float32)
        CIL = np.clip(CIN - LO, 0, g_cin - 1)
        T = np.broadcast_to(t_idx[:, None], (n, R))
        return ws[T, CIL, CO] * VALID              # (n, R)

    cols1 = conv_cols(w1s, d1_list, C, Ce)         # dense conv == one big group
    cols2 = conv_cols(w2s, d2_list, cin_g, cout_g)
    b1 = bias1.astype(jnp.float32)[co_r]
    b2 = bias2.astype(jnp.float32)[co_r]
    w_tile = jnp.concatenate([jnp.transpose(cols1), b1[:, None],
                              jnp.transpose(cols2), b2[:, None]], axis=1)
    NCOL = w_tile.shape[1]

    kernel = functools.partial(resblock_kernel, Wp=Wp, H=H, W=W, Nb=Nb,
                               d1_list=tuple(d1_list), d2_list=tuple(d2_list))

    out_stk = pl.pallas_call(
        kernel,
        out_shape=jax.ShapeDtypeStruct((NBLK * R, S), jnp.float32),
        grid=(NBLK,),
        in_specs=[
            pl.BlockSpec((R, S), lambda b: (b, 0)),       # packed image block
            pl.BlockSpec((R, NCOL), lambda b: (0, 0)),    # weight/bias columns
        ],
        out_specs=pl.BlockSpec((R, S), lambda b: (b, 0)),
        compiler_params=pltpu.CompilerParams(
            dimension_semantics=("parallel",)),
    )(x_stk, w_tile)

    # un-stack, crop back to (N, Ce, H, W)
    out = (out_stk.reshape(NBLK, C, Nb, S).transpose(0, 2, 1, 3)
           .reshape(Npad, C, S)[:N, :, :S0]
           .reshape(N, C, Hp, Wp)[:, :, 1:H + 1, 1:W + 1])
    return out


def reference_nchw(x, w1_hwio, w2_hwio_grp, scale1, bias1, scale2, bias2, groups):
    """Pure-JAX reference of the PyTorch forward (eval-mode BN), NCHW."""
    dn = ('NCHW', 'HWIO', 'NCHW')
    y = jax.lax.conv_general_dilated(x, w1_hwio, (1, 1), 'SAME',
                                     dimension_numbers=dn)
    y = jnp.maximum(y * scale1[None, :, None, None]
                    + bias1[None, :, None, None], 0.0)
    y = jax.lax.conv_general_dilated(y, w2_hwio_grp, (1, 1), 'SAME',
                                     dimension_numbers=dn,
                                     feature_group_count=groups)
    y = y * scale2[None, :, None, None] + bias2[None, :, None, None]
    return jnp.maximum(y + x, 0.0)


if __name__ == "__main__":
    # Module config: channels=4, expansion=1 (identity shortcut), groups=4.
    N, C, H, W = 2, 4, 16, 16
    expansion, groups = 1, 4
    Ce = C * expansion
    eps = 1e-3

    key = jax.random.PRNGKey(0)
    ks = jax.random.split(key, 12)

    x = jax.random.normal(ks[0], (N, C, H, W), jnp.float32)          # NCHW

    w1 = 0.2 * jax.random.normal(ks[1], (3, 3, C, Ce), jnp.float32)          # HWIO
    w2_grp = 0.2 * jax.random.normal(ks[2], (3, 3, Ce // groups, Ce),
                                     jnp.float32)                            # HWIO, grouped

    g1 = 1.0 + 0.1 * jax.random.normal(ks[3], (Ce,), jnp.float32)
    be1 = 0.1 * jax.random.normal(ks[4], (Ce,), jnp.float32)
    rm1 = 0.1 * jax.random.normal(ks[5], (Ce,), jnp.float32)
    rv1 = 1.0 + 0.5 * jax.random.uniform(ks[6], (Ce,), jnp.float32)
    g2 = 1.0 + 0.1 * jax.random.normal(ks[7], (Ce,), jnp.float32)
    be2 = 0.1 * jax.random.normal(ks[8], (Ce,), jnp.float32)
    rm2 = 0.1 * jax.random.normal(ks[9], (Ce,), jnp.float32)
    rv2 = 1.0 + 0.5 * jax.random.uniform(ks[10], (Ce,), jnp.float32)

    # fold eval-mode BatchNorm into per-channel scale/bias
    scale1 = g1 / jnp.sqrt(rv1 + eps)
    bias1 = be1 - rm1 * scale1
    scale2 = g2 / jnp.sqrt(rv2 + eps)
    bias2 = be2 - rm2 * scale2

    out = enhanced_quant_residual_block(x, w1, w2_grp,
                                        scale1, bias1, scale2, bias2, groups)
    jax.block_until_ready(out)

    ref = reference_nchw(x, w1, w2_grp, scale1, bias1, scale2, bias2, groups)
    assert out.shape == (N, Ce, H, W)
    assert jnp.allclose(out, ref, atol=1e-4, rtol=1e-4), "mismatch vs reference"

    print("KERNEL_OK")
</pallas_src>

<mosaic_0001>
module attributes {stable_mosaic.version = 11 : i64} {
  func.func @resblock_kernel(%arg0: i32, %arg1: memref<8x384xf32, #tpu.memory_space<vmem>>, %arg2: memref<8x47xf32, #tpu.memory_space<vmem>>, %arg3: memref<8x384xf32, #tpu.memory_space<vmem>>) attributes {dimension_semantics = [#tpu.dimension_semantics<parallel>], iteration_bounds = array<i64: 1>, scalar_prefetch = 0 : i64, scratch_operands = 0 : i64, tpu.core_type = #tpu.core_type<tc>, window_params = [{transform_indices = @transform_0, window_bounds = array<i64: 8, 384>}, {pipeline_mode = #tpu.pipeline_mode<synchronous>, transform_indices = @transform_1, window_bounds = array<i64: 8, 47>}, {transform_indices = @transform_2, window_bounds = array<i64: 8, 384>}]} {
    %0 = tpu.iota {dimensions = array<i32: 1>} : vector<1x384xi32>
    %1 = arith.sitofp %0 : vector<1x384xi32> to vector<1x384xf32>
    %cst = arith.constant 5.000000e-01 : f32
    %2 = vector.broadcast %cst : f32 to vector<1x384xf32>
    %3 = arith.addf %1, %2 : vector<1x384xf32>
    %cst_0 = arith.constant 0.055555556 : f32
    %4 = vector.broadcast %cst_0 : f32 to vector<1x384xf32>
    %5 = arith.mulf %3, %4 : vector<1x384xf32>
    %6 = math.floor %5 : vector<1x384xf32>
    %cst_1 = arith.constant 1.800000e+01 : f32
    %7 = vector.broadcast %cst_1 : f32 to vector<1x384xf32>
    %8 = arith.mulf %6, %7 : vector<1x384xf32>
    %9 = arith.subf %1, %8 : vector<1x384xf32>
    %cst_2 = arith.constant 1.000000e+00 : f32
    %10 = vector.broadcast %cst_2 : f32 to vector<1x384xf32>
    %11 = arith.cmpf oge, %6, %10 : vector<1x384xf32>
    %cst_3 = arith.constant 1.600000e+01 : f32
    %12 = vector.broadcast %cst_3 : f32 to vector<1x384xf32>
    %13 = arith.cmpf ole, %6, %12 : vector<1x384xf32>
    %14 = arith.andi %11, %13 : vector<1x384xi1>
    %cst_4 = arith.constant 1.000000e+00 : f32
    %15 = vector.broadcast %cst_4 : f32 to vector<1x384xf32>
    %16 = arith.cmpf oge, %9, %15 : vector<1x384xf32>
    %17 = arith.andi %14, %16 : vector<1x384xi1>
    %cst_5 = arith.constant 1.600000e+01 : f32
    %18 = vector.broadcast %cst_5 : f32 to vector<1x384xf32>
    %19 = arith.cmpf ole, %9, %18 : vector<1x384xf32>
    %20 = arith.andi %17, %19 : vector<1x384xi1>
    %cst_6 = arith.constant 1.000000e+00 : f32
    %cst_7 = arith.constant 0.000000e+00 : f32
    %21 = vector.broadcast %cst_6 : f32 to vector<1x384xf32>
    %22 = vector.broadcast %cst_7 : f32 to vector<1x384xf32>
    %23 = arith.select %20, %21, %22 : vector<1x384xi1>, vector<1x384xf32>
    %c0 = arith.constant 0 : index
    %c0_8 = arith.constant 0 : index
    %24 = vector.load %arg1[%c0, %c0_8] : memref<8x384xf32, #tpu.memory_space<vmem>>, vector<8x384xf32>
    %cst_9 = arith.constant 0.000000e+00 : f32
    %25 = vector.broadcast %cst_9 : f32 to vector<8x384xf32>
    %c19_i32 = arith.constant 19 : i32
    %26 = tpu.dynamic_rotate %24 by %c19_i32 dim 1 : vector<8x384xf32>, i32 -> vector<8x384xf32>
    %c0_10 = arith.constant 0 : index
    %c0_11 = arith.constant 0 : index
    %27 = vector.load %arg2[%c0_10, %c0_11] : memref<8x47xf32, #tpu.memory_space<vmem>>, vector<8x1xf32>
    %28 = vector.broadcast %27 : vector<8x1xf32> to vector<8x384xf32>
    %29 = arith.mulf %28, %26 : vector<8x384xf32>
    %30 = arith.addf %25, %29 : vector<8x384xf32>
    %c0_12 = arith.constant 0 : index
    %c1 = arith.constant 1 : index
    %31 = vector.load %arg2[%c0_12, %c1] : memref<8x47xf32, #tpu.memory_space<vmem>>, vector<8x1xf32>
    %c6_i32 = arith.constant 6 : i32
    %32 = tpu.dynamic_rotate %26 by %c6_i32 dim 0 : vector<8x384xf32>, i32 -> vector<8x384xf32>
    %33 = vector.broadcast %31 : vector<8x1xf32> to vector<8x384xf32>
    %34 = arith.mulf %33, %32 : vector<8x384xf32>
    %35 = arith.addf %30, %34 : vector<8x384xf32>
    %c0_13 = arith.constant 0 : index
    %c2 = arith.constant 2 : index
    %36 = vector.load %arg2[%c0_13, %c2] : memref<8x47xf32, #tpu.memory_space<vmem>>, vector<8x1xf32>
    %c4_i32 = arith.constant 4 : i32
    %37 = tpu.dynamic_rotate %26 by %c4_i32 dim 0 : vector<8x384xf32>, i32 -> vector<8x384xf32>
    %38 = vector.broadcast %36 : vector<8x1xf32> to vector<8x384xf32>
    %39 = arith.mulf %38, %37 : vector<8x384xf32>
    %40 = arith.addf %35, %39 : vector<8x384xf32>
    %c0_14 = arith.constant 0 : index
    %c3 = arith.constant 3 : index
    %41 = vector.load %arg2[%c0_14, %c3] : memref<8x47xf32, #tpu.memory_space<vmem>>, vector<8x1xf32>
    %c2_i32 = arith.constant 2 : i32
    %42 = tpu.dynamic_rotate %26 by %c2_i32 dim 0 : vector<8x384xf32>, i32 -> vector<8x384xf32>
    %43 = vector.broadcast %41 : vector<8x1xf32> to vector<8x384xf32>
    %44 = arith.mulf %43, %42 : vector<8x384xf32>
    %45 = arith.addf %40, %44 : vector<8x384xf32>
    %c18_i32 = arith.constant 18 : i32
    %46 = tpu.dynamic_rotate %24 by %c18_i32 dim 1 : vector<8x384xf32>, i32 -> vector<8x384xf32>
    %c0_15 = arith.constant 0 : index
    %c4 = arith.constant 4 : index
    %47 = vector.load %arg2[%c0_15, %c4] : memref<8x47xf32, #tpu.memory_space<vmem>>, vector<8x1xf32>
    %48 = vector.broadcast %47 : vector<8x1xf32> to vector<8x384xf32>
    %49 = arith.mulf %48, %46 : vector<8x384xf32>
    %50 = arith.addf %45, %49 : vector<8x384xf32>
    %c0_16 = arith.constant 0 : index
    %c5 = arith.constant 5 : index
    %51 = vector.load %arg2[%c0_16, %c5] : memref<8x47xf32, #tpu.memory_space<vmem>>, vector<8x1xf32>
    %c6_i32_17 = arith.constant 6 : i32
    %52 = tpu.dynamic_rotate %46 by %c6_i32_17 dim 0 : vector<8x384xf32>, i32 -> vector<8x384xf32>
    %53 = vector.broadcast %51 : vector<8x1xf32> to vector<8x384xf32>
    %54 = arith.mulf %53, %52 : vector<8x384xf32>
    %55 = arith.addf %50, %54 : vector<8x384xf32>
    %c0_18 = arith.constant 0 : index
    %c6 = arith.constant 6 : index
    %56 = vector.load %arg2[%c0_18, %c6] : memref<8x47xf32, #tpu.memory_space<vmem>>, vector<8x1xf32>
    %c4_i32_19 = arith.constant 4 : i32
    %57 = tpu.dynamic_rotate %46 by %c4_i32_19 dim 0 : vector<8x384xf32>, i32 -> vector<8x384xf32>
    %58 = vector.broadcast %56 : vector<8x1xf32> to vector<8x384xf32>
    %59 = arith.mulf %58, %57 : vector<8x384xf32>
    %60 = arith.addf %55, %59 : vector<8x384xf32>
    %c0_20 = arith.constant 0 : index
    %c7 = arith.constant 7 : index
    %61 = vector.load %arg2[%c0_20, %c7] : memref<8x47xf32, #tpu.memory_space<vmem>>, vector<8x1xf32>
    %c2_i32_21 = arith.constant 2 : i32
    %62 = tpu.dynamic_rotate %46 by %c2_i32_21 dim 0 : vector<8x384xf32>, i32 -> vector<8x384xf32>
    %63 = vector.broadcast %61 : vector<8x1xf32> to vector<8x384xf32>
    %64 = arith.mulf %63, %62 : vector<8x384xf32>
    %65 = arith.addf %60, %64 : vector<8x384xf32>
    %c17_i32 = arith.constant 17 : i32
    %66 = tpu.dynamic_rotate %24 by %c17_i32 dim 1 : vector<8x384xf32>, i32 -> vector<8x384xf32>
    %c0_22 = arith.constant 0 : index
    %c8 = arith.constant 8 : index
    %67 = vector.load %arg2[%c0_22, %c8] : memref<8x47xf32, #tpu.memory_space<vmem>>, vector<8x1xf32>
    %68 = vector.broadcast %67 : vector<8x1xf32> to vector<8x384xf32>
    %69 = arith.mulf %68, %66 : vector<8x384xf32>
    %70 = arith.addf %65, %69 : vector<8x384xf32>
    %c0_23 = arith.constant 0 : index
    %c9 = arith.constant 9 : index
    %71 = vector.load %arg2[%c0_23, %c9] : memref<8x47xf32, #tpu.memory_space<vmem>>, vector<8x1xf32>
    %c6_i32_24 = arith.constant 6 : i32
    %72 = tpu.dynamic_rotate %66 by %c6_i32_24 dim 0 : vector<8x384xf32>, i32 -> vector<8x384xf32>
    %73 = vector.broadcast %71 : vector<8x1xf32> to vector<8x384xf32>
    %74 = arith.mulf %73, %72 : vector<8x384xf32>
    %75 = arith.addf %70, %74 : vector<8x384xf32>
    %c0_25 = arith.constant 0 : index
    %c10 = arith.constant 10 : index
    %76 = vector.load %arg2[%c0_25, %c10] : memref<8x47xf32, #tpu.memory_space<vmem>>, vector<8x1xf32>
    %c4_i32_26 = arith.constant 4 : i32
    %77 = tpu.dynamic_rotate %66 by %c4_i32_26 dim 0 : vector<8x384xf32>, i32 -> vector<8x384xf32>
    %78 = vector.broadcast %76 : vector<8x1xf32> to vector<8x384xf32>
    %79 = arith.mulf %78, %77 : vector<8x384xf32>
    %80 = arith.addf %75, %79 : vector<8x384xf32>
    %c0_27 = arith.constant 0 : index
    %c11 = arith.constant 11 : index
    %81 = vector.load %arg2[%c0_27, %c11] : memref<8x47xf32, #tpu.memory_space<vmem>>, vector<8x1xf32>
    %c2_i32_28 = arith.constant 2 : i32
    %82 = tpu.dynamic_rotate %66 by %c2_i32_28 dim 0 : vector<8x384xf32>, i32 -> vector<8x384xf32>
    %83 = vector.broadcast %81 : vector<8x1xf32> to vector<8x384xf32>
    %84 = arith.mulf %83, %82 : vector<8x384xf32>
    %85 = arith.addf %80, %84 : vector<8x384xf32>
    %c1_i32 = arith.constant 1 : i32
    %86 = tpu.dynamic_rotate %24 by %c1_i32 dim 1 : vector<8x384xf32>, i32 -> vector<8x384xf32>
    %c0_29 = arith.constant 0 : index
    %c12 = arith.constant 12 : index
    %87 = vector.load %arg2[%c0_29, %c12] : memref<8x47xf32, #tpu.memory_space<vmem>>, vector<8x1xf32>
    %88 = vector.broadcast %87 : vector<8x1xf32> to vector<8x384xf32>
    %89 = arith.mulf %88, %86 : vector<8x384xf32>
    %90 = arith.addf %85, %89 : vector<8x384xf32>
    %c0_30 = arith.constant 0 : index
    %c13 = arith.constant 13 : index
    %91 = vector.load %arg2[%c0_30, %c13] : memref<8x47xf32, #tpu.memory_space<vmem>>, vector<8x1xf32>
    %c6_i32_31 = arith.constant 6 : i32
    %92 = tpu.dynamic_rotate %86 by %c6_i32_31 dim 0 : vector<8x384xf32>, i32 -> vector<8x384xf32>
    %93 = vector.broadcast %91 : vector<8x1xf32> to vector<8x384xf32>
    %94 = arith.mulf %93, %92 : vector<8x384xf32>
    %95 = arith.addf %90, %94 : vector<8x384xf32>
    %c0_32 = arith.constant 0 : index
    %c14 = arith.constant 14 : index
    %96 = vector.load %arg2[%c0_32, %c14] : memref<8x47xf32, #tpu.memory_space<vmem>>, vector<8x1xf32>
    %c4_i32_33 = arith.constant 4 : i32
    %97 = tpu.dynamic_rotate %86 by %c4_i32_33 dim 0 : vector<8x384xf32>, i32 -> vector<8x384xf32>
    %98 = vector.broadcast %96 : vector<8x1xf32> to vector<8x384xf32>
    %99 = arith.mulf %98, %97 : vector<8x384xf32>
    %100 = arith.addf %95, %99 : vector<8x384xf32>
    %c0_34 = arith.constant 0 : index
    %c15 = arith.constant 15 : index
    %101 = vector.load %arg2[%c0_34, %c15] : memref<8x47xf32, #tpu.memory_space<vmem>>, vector<8x1xf32>
    %c2_i32_35 = arith.constant 2 : i32
    %102 = tpu.dynamic_rotate %86 by %c2_i32_35 dim 0 : vector<8x384xf32>, i32 -> vector<8x384xf32>
    %103 = vector.broadcast %101 : vector<8x1xf32> to vector<8x384xf32>
    %104 = arith.mulf %103, %102 : vector<8x384xf32>
    %105 = arith.addf %100, %104 : vector<8x384xf32>
    %c0_36 = arith.constant 0 : index
    %c16 = arith.constant 16 : index
    %106 = vector.load %arg2[%c0_36, %c16] : memref<8x47xf32, #tpu.memory_space<vmem>>, vector<8x1xf32>
    %107 = vector.broadcast %106 : vector<8x1xf32> to vector<8x384xf32>
    %108 = arith.mulf %107, %24 : vector<8x384xf32>
    %109 = arith.addf %105, %108 : vector<8x384xf32>
    %c0_37 = arith.constant 0 : index
    %c17 = arith.constant 17 : index
    %110 = vector.load %arg2[%c0_37, %c17] : memref<8x47xf32, #tpu.memory_space<vmem>>, vector<8x1xf32>
    %c6_i32_38 = arith.constant 6 : i32
    %111 = tpu.dynamic_rotate %24 by %c6_i32_38 dim 0 : vector<8x384xf32>, i32 -> vector<8x384xf32>
    %112 = vector.broadcast %110 : vector<8x1xf32> to vector<8x384xf32>
    %113 = arith.mulf %112, %111 : vector<8x384xf32>
    %114 = arith.addf %109, %113 : vector<8x384xf32>
    %c0_39 = arith.constant 0 : index
    %c18 = arith.constant 18 : index
    %115 = vector.load %arg2[%c0_39, %c18] : memref<8x47xf32, #tpu.memory_space<vmem>>, vector<8x1xf32>
    %c4_i32_40 = arith.constant 4 : i32
    %116 = tpu.dynamic_rotate %24 by %c4_i32_40 dim 0 : vector<8x384xf32>, i32 -> vector<8x384xf32>
    %117 = vector.broadcast %115 : vector<8x1xf32> to vector<8x384xf32>
    %118 = arith.mulf %117, %116 : vector<8x384xf32>
    %119 = arith.addf %114, %118 : vector<8x384xf32>
    %c0_41 = arith.constant 0 : index
    %c19 = arith.constant 19 : index
    %120 = vector.load %arg2[%c0_41, %c19] : memref<8x47xf32, #tpu.memory_space<vmem>>, vector<8x1xf32>
    %c2_i32_42 = arith.constant 2 : i32
    %121 = tpu.dynamic_rotate %24 by %c2_i32_42 dim 0 : vector<8x384xf32>, i32 -> vector<8x384xf32>
    %122 = vector.broadcast %120 : vector<8x1xf32> to vector<8x384xf32>
    %123 = arith.mulf %122, %121 : vector<8x384xf32>
    %124 = arith.addf %119, %123 : vector<8x384xf32>
    %c383_i32 = arith.constant 383 : i32
    %125 = tpu.dynamic_rotate %24 by %c383_i32 dim 1 : vector<8x384xf32>, i32 -> vector<8x384xf32>
    %c0_43 = arith.constant 0 : index
    %c20 = arith.constant 20 : index
    %126 = vector.load %arg2[%c0_43, %c20] : memref<8x47xf32, #tpu.memory_space<vmem>>, vector<8x1xf32>
    %127 = vector.broadcast %126 : vector<8x1xf32> to vector<8x384xf32>
    %128 = arith.mulf %127, %125 : vector<8x384xf32>
    %129 = arith.addf %124, %128 : vector<8x384xf32>
    %c0_44 = arith.constant 0 : index
    %c21 = arith.constant 21 : index
    %130 = vector.load %arg2[%c0_44, %c21] : memref<8x47xf32, #tpu.memory_space<vmem>>, vector<8x1xf32>
    %c6_i32_45 = arith.constant 6 : i32
    %131 = tpu.dynamic_rotate %125 by %c6_i32_45 dim 0 : vector<8x384xf32>, i32 -> vector<8x384xf32>
    %132 = vector.broadcast %130 : vector<8x1xf32> to vector<8x384xf32>
    %133 = arith.mulf %132, %131 : vector<8x384xf32>
    %134 = arith.addf %129, %133 : vector<8x384xf32>
    %c0_46 = arith.constant 0 : index
    %c22 = arith.constant 22 : index
    %135 = vector.load %arg2[%c0_46, %c22] : memref<8x47xf32, #tpu.memory_space<vmem>>, vector<8x1xf32>
    %c4_i32_47 = arith.constant 4 : i32
    %136 = tpu.dynamic_rotate %125 by %c4_i32_47 dim 0 : vector<8x384xf32>, i32 -> vector<8x384xf32>
    %137 = vector.broadcast %135 : vector<8x1xf32> to vector<8x384xf32>
    %138 = arith.mulf %137, %136 : vector<8x384xf32>
    %139 = arith.addf %134, %138 : vector<8x384xf32>
    %c0_48 = arith.constant 0 : index
    %c23 = arith.constant 23 : index
    %140 = vector.load %arg2[%c0_48, %c23] : memref<8x47xf32, #tpu.memory_space<vmem>>, vector<8x1xf32>
    %c2_i32_49 = arith.constant 2 : i32
    %141 = tpu.dynamic_rotate %125 by %c2_i32_49 dim 0 : vector<8x384xf32>, i32 -> vector<8x384xf32>
    %142 = vector.broadcast %140 : vector<8x1xf32> to vector<8x384xf32>
    %143 = arith.mulf %142, %141 : vector<8x384xf32>
    %144 = arith.addf %139, %143 : vector<8x384xf32>
    %c367_i32 = arith.constant 367 : i32
    %145 = tpu.dynamic_rotate %24 by %c367_i32 dim 1 : vector<8x384xf32>, i32 -> vector<8x384xf32>
    %c0_50 = arith.constant 0 : index
    %c24 = arith.constant 24 : index
    %146 = vector.load %arg2[%c0_50, %c24] : memref<8x47xf32, #tpu.memory_space<vmem>>, vector<8x1xf32>
    %147 = vector.broadcast %146 : vector<8x1xf32> to vector<8x384xf32>
    %148 = arith.mulf %147, %145 : vector<8x384xf32>
    %149 = arith.addf %144, %148 : vector<8x384xf32>
    %c0_51 = arith.constant 0 : index
    %c25 = arith.constant 25 : index
    %150 = vector.load %arg2[%c0_51, %c25] : memref<8x47xf32, #tpu.memory_space<vmem>>, vector<8x1xf32>
    %c6_i32_52 = arith.constant 6 : i32
    %151 = tpu.dynamic_rotate %145 by %c6_i32_52 dim 0 : vector<8x384xf32>, i32 -> vector<8x384xf32>
    %152 = vector.broadcast %150 : vector<8x1xf32> to vector<8x384xf32>
    %153 = arith.mulf %152, %151 : vector<8x384xf32>
    %154 = arith.addf %149, %153 : vector<8x384xf32>
    %c0_53 = arith.constant 0 : index
    %c26 = arith.constant 26 : index
    %155 = vector.load %arg2[%c0_53, %c26] : memref<8x47xf32, #tpu.memory_space<vmem>>, vector<8x1xf32>
    %c4_i32_54 = arith.constant 4 : i32
    %156 = tpu.dynamic_rotate %145 by %c4_i32_54 dim 0 : vector<8x384xf32>, i32 -> vector<8x384xf32>
    %157 = vector.broadcast %155 : vector<8x1xf32> to vector<8x384xf32>
    %158 = arith.mulf %157, %156 : vector<8x384xf32>
    %159 = arith.addf %154, %158 : vector<8x384xf32>
    %c0_55 = arith.constant 0 : index
    %c27 = arith.constant 27 : index
    %160 = vector.load %arg2[%c0_55, %c27] : memref<8x47xf32, #tpu.memory_space<vmem>>, vector<8x1xf32>
    %c2_i32_56 = arith.constant 2 : i32
    %161 = tpu.dynamic_rotate %145 by %c2_i32_56 dim 0 : vector<8x384xf32>, i32 -> vector<8x384xf32>
    %162 = vector.broadcast %160 : vector<8x1xf32> to vector<8x384xf32>
    %163 = arith.mulf %162, %161 : vector<8x384xf32>
    %164 = arith.addf %159, %163 : vector<8x384xf32>
    %c366_i32 = arith.constant 366 : i32
    %165 = tpu.dynamic_rotate %24 by %c366_i32 dim 1 : vector<8x384xf32>, i32 -> vector<8x384xf32>
    %c0_57 = arith.constant 0 : index
    %c28 = arith.constant 28 : index
    %166 = vector.load %arg2[%c0_57, %c28] : memref<8x47xf32, #tpu.memory_space<vmem>>, vector<8x1xf32>
    %167 = vector.broadcast %166 : vector<8x1xf32> to vector<8x384xf32>
    %168 = arith.mulf %167, %165 : vector<8x384xf32>
    %169 = arith.addf %164, %168 : vector<8x384xf32>
    %c0_58 = arith.constant 0 : index
    %c29 = arith.constant 29 : index
    %170 = vector.load %arg2[%c0_58, %c29] : memref<8x47xf32, #tpu.memory_space<vmem>>, vector<8x1xf32>
    %c6_i32_59 = arith.constant 6 : i32
    %171 = tpu.dynamic_rotate %165 by %c6_i32_59 dim 0 : vector<8x384xf32>, i32 -> vector<8x384xf32>
    %172 = vector.broadcast %170 : vector<8x1xf32> to vector<8x384xf32>
    %173 = arith.mulf %172, %171 : vector<8x384xf32>
    %174 = arith.addf %169, %173 : vector<8x384xf32>
    %c0_60 = arith.constant 0 : index
    %c30 = arith.constant 30 : index
    %175 = vector.load %arg2[%c0_60, %c30] : memref<8x47xf32, #tpu.memory_space<vmem>>, vector<8x1xf32>
    %c4_i32_61 = arith.constant 4 : i32
    %176 = tpu.dynamic_rotate %165 by %c4_i32_61 dim 0 : vector<8x384xf32>, i32 -> vector<8x384xf32>
    %177 = vector.broadcast %175 : vector<8x1xf32> to vector<8x384xf32>
    %178 = arith.mulf %177, %176 : vector<8x384xf32>
    %179 = arith.addf %174, %178 : vector<8x384xf32>
    %c0_62 = arith.constant 0 : index
    %c31 = arith.constant 31 : index
    %180 = vector.load %arg2[%c0_62, %c31] : memref<8x47xf32, #tpu.memory_space<vmem>>, vector<8x1xf32>
    %c2_i32_63 = arith.constant 2 : i32
    %181 = tpu.dynamic_rotate %165 by %c2_i32_63 dim 0 : vector<8x384xf32>, i32 -> vector<8x384xf32>
    %182 = vector.broadcast %180 : vector<8x1xf32> to vector<8x384xf32>
    %183 = arith.mulf %182, %181 : vector<8x384xf32>
    %184 = arith.addf %179, %183 : vector<8x384xf32>
    %c365_i32 = arith.constant 365 : i32
    %185 = tpu.dynamic_rotate %24 by %c365_i32 dim 1 : vector<8x384xf32>, i32 -> vector<8x384xf32>
    %c0_64 = arith.constant 0 : index
    %c32 = arith.constant 32 : index
    %186 = vector.load %arg2[%c0_64, %c32] : memref<8x47xf32, #tpu.memory_space<vmem>>, vector<8x1xf32>
    %187 = vector.broadcast %186 : vector<8x1xf32> to vector<8x384xf32>
    %188 = arith.mulf %187, %185 : vector<8x384xf32>
    %189 = arith.addf %184, %188 : vector<8x384xf32>
    %c0_65 = arith.constant 0 : index
    %c33 = arith.constant 33 : index
    %190 = vector.load %arg2[%c0_65, %c33] : memref<8x47xf32, #tpu.memory_space<vmem>>, vector<8x1xf32>
    %c6_i32_66 = arith.constant 6 : i32
    %191 = tpu.dynamic_rotate %185 by %c6_i32_66 dim 0 : vector<8x384xf32>, i32 -> vector<8x384xf32>
    %192 = vector.broadcast %190 : vector<8x1xf32> to vector<8x384xf32>
    %193 = arith.mulf %192, %191 : vector<8x384xf32>
    %194 = arith.addf %189, %193 : vector<8x384xf32>
    %c0_67 = arith.constant 0 : index
    %c34 = arith.constant 34 : index
    %195 = vector.load %arg2[%c0_67, %c34] : memref<8x47xf32, #tpu.memory_space<vmem>>, vector<8x1xf32>
    %c4_i32_68 = arith.constant 4 : i32
    %196 = tpu.dynamic_rotate %185 by %c4_i32_68 dim 0 : vector<8x384xf32>, i32 -> vector<8x384xf32>
    %197 = vector.broadcast %195 : vector<8x1xf32> to vector<8x384xf32>
    %198 = arith.mulf %197, %196 : vector<8x384xf32>
    %199 = arith.addf %194, %198 : vector<8x384xf32>
    %c0_69 = arith.constant 0 : index
    %c35 = arith.constant 35 : index
    %200 = vector.load %arg2[%c0_69, %c35] : memref<8x47xf32, #tpu.memory_space<vmem>>, vector<8x1xf32>
    %c2_i32_70 = arith.constant 2 : i32
    %201 = tpu.dynamic_rotate %185 by %c2_i32_70 dim 0 : vector<8x384xf32>, i32 -> vector<8x384xf32>
    %202 = vector.broadcast %200 : vector<8x1xf32> to vector<8x384xf32>
    %203 = arith.mulf %202, %201 : vector<8x384xf32>
    %204 = arith.addf %199, %203 : vector<8x384xf32>
    %c0_71 = arith.constant 0 : index
    %c36 = arith.constant 36 : index
    %205 = vector.load %arg2[%c0_71, %c36] : memref<8x47xf32, #tpu.memory_space<vmem>>, vector<8x1xf32>
    %206 = vector.broadcast %205 : vector<8x1xf32> to vector<8x384xf32>
    %207 = arith.addf %204, %206 : vector<8x384xf32>
    %cst_72 = arith.constant 0.000000e+00 : f32
    %208 = vector.broadcast %cst_72 : f32 to vector<8x384xf32>
    %209 = arith.maximumf %207, %208 : vector<8x384xf32>
    %210 = vector.broadcast %23 : vector<1x384xf32> to vector<8x384xf32>
    %211 = arith.mulf %209, %210 : vector<8x384xf32>
    %cst_73 = arith.constant 0.000000e+00 : f32
    %212 = vector.broadcast %cst_73 : f32 to vector<8x384xf32>
    %c19_i32_74 = arith.constant 19 : i32
    %213 = tpu.dynamic_rotate %211 by %c19_i32_74 dim 1 : vector<8x384xf32>, i32 -> vector<8x384xf32>
    %c0_75 = arith.constant 0 : index
    %c37 = arith.constant 37 : index
    %214 = vector.load %arg2[%c0_75, %c37] : memref<8x47xf32, #tpu.memory_space<vmem>>, vector<8x1xf32>
    %215 = vector.broadcast %214 : vector<8x1xf32> to vector<8x384xf32>
    %216 = arith.mulf %215, %213 : vector<8x384xf32>
    %217 = arith.addf %212, %216 : vector<8x384xf32>
    %c18_i32_76 = arith.constant 18 : i32
    %218 = tpu.dynamic_rotate %211 by %c18_i32_76 dim 1 : vector<8x384xf32>, i32 -> vector<8x384xf32>
    %c0_77 = arith.constant 0 : index
    %c38 = arith.constant 38 : index
    %219 = vector.load %arg2[%c0_77, %c38] : memref<8x47xf32, #tpu.memory_space<vmem>>, vector<8x1xf32>
    %220 = vector.broadcast %219 : vector<8x1xf32> to vector<8x384xf32>
    %221 = arith.mulf %220, %218 : vector<8x384xf32>
    %222 = arith.addf %217, %221 : vector<8x384xf32>
    %c17_i32_78 = arith.constant 17 : i32
    %223 = tpu.dynamic_rotate %211 by %c17_i32_78 dim 1 : vector<8x384xf32>, i32 -> vector<8x384xf32>
    %c0_79 = arith.constant 0 : index
    %c39 = arith.constant 39 : index
    %224 = vector.load %arg2[%c0_79, %c39] : memref<8x47xf32, #tpu.memory_space<vmem>>, vector<8x1xf32>
    %225 = vector.broadcast %224 : vector<8x1xf32> to vector<8x384xf32>
    %226 = arith.mulf %225, %223 : vector<8x384xf32>
    %227 = arith.addf %222, %226 : vector<8x384xf32>
    %c1_i32_80 = arith.constant 1 : i32
    %228 = tpu.dynamic_rotate %211 by %c1_i32_80 dim 1 : vector<8x384xf32>, i32 -> vector<8x384xf32>
    %c0_81 = arith.constant 0 : index
    %c40 = arith.constant 40 : index
    %229 = vector.load %arg2[%c0_81, %c40] : memref<8x47xf32, #tpu.memory_space<vmem>>, vector<8x1xf32>
    %230 = vector.broadcast %229 : vector<8x1xf32> to vector<8x384xf32>
    %231 = arith.mulf %230, %228 : vector<8x384xf32>
    %232 = arith.addf %227, %231 : vector<8x384xf32>
    %c0_82 = arith.constant 0 : index
    %c41 = arith.constant 41 : index
    %233 = vector.load %arg2[%c0_82, %c41] : memref<8x47xf32, #tpu.memory_space<vmem>>, vector<8x1xf32>
    %234 = vector.broadcast %233 : vector<8x1xf32> to vector<8x384xf32>
    %235 = arith.mulf %234, %211 : vector<8x384xf32>
    %236 = arith.addf %232, %235 : vector<8x384xf32>
    %c383_i32_83 = arith.constant 383 : i32
    %237 = tpu.dynamic_rotate %211 by %c383_i32_83 dim 1 : vector<8x384xf32>, i32 -> vector<8x384xf32>
    %c0_84 = arith.constant 0 : index
    %c42 = arith.constant 42 : index
    %238 = vector.load %arg2[%c0_84, %c42] : memref<8x47xf32, #tpu.memory_space<vmem>>, vector<8x1xf32>
    %239 = vector.broadcast %238 : vector<8x1xf32> to vector<8x384xf32>
    %240 = arith.mulf %239, %237 : vector<8x384xf32>
    %241 = arith.addf %236, %240 : vector<8x384xf32>
    %c367_i32_85 = arith.constant 367 : i32
    %242 = tpu.dynamic_rotate %211 by %c367_i32_85 dim 1 : vector<8x384xf32>, i32 -> vector<8x384xf32>
    %c0_86 = arith.constant 0 : index
    %c43 = arith.constant 43 : index
    %243 = vector.load %arg2[%c0_86, %c43] : memref<8x47xf32, #tpu.memory_space<vmem>>, vector<8x1xf32>
    %244 = vector.broadcast %243 : vector<8x1xf32> to vector<8x384xf32>
    %245 = arith.mulf %244, %242 : vector<8x384xf32>
    %246 = arith.addf %241, %245 : vector<8x384xf32>
    %c366_i32_87 = arith.constant 366 : i32
    %247 = tpu.dynamic_rotate %211 by %c366_i32_87 dim 1 : vector<8x384xf32>, i32 -> vector<8x384xf32>
    %c0_88 = arith.constant 0 : index
    %c44 = arith.constant 44 : index
    %248 = vector.load %arg2[%c0_88, %c44] : memref<8x47xf32, #tpu.memory_space<vmem>>, vector<8x1xf32>
    %249 = vector.broadcast %248 : vector<8x1xf32> to vector<8x384xf32>
    %250 = arith.mulf %249, %247 : vector<8x384xf32>
    %251 = arith.addf %246, %250 : vector<8x384xf32>
    %c365_i32_89 = arith.constant 365 : i32
    %252 = tpu.dynamic_rotate %211 by %c365_i32_89 dim 1 : vector<8x384xf32>, i32 -> vector<8x384xf32>
    %c0_90 = arith.constant 0 : index
    %c45 = arith.constant 45 : index
    %253 = vector.load %arg2[%c0_90, %c45] : memref<8x47xf32, #tpu.memory_space<vmem>>, vector<8x1xf32>
    %254 = vector.broadcast %253 : vector<8x1xf32> to vector<8x384xf32>
    %255 = arith.mulf %254, %252 : vector<8x384xf32>
    %256 = arith.addf %251, %255 : vector<8x384xf32>
    %c0_91 = arith.constant 0 : index
    %c46 = arith.constant 46 : index
    %257 = vector.load %arg2[%c0_91, %c46] : memref<8x47xf32, #tpu.memory_space<vmem>>, vector<8x1xf32>
    %258 = vector.broadcast %257 : vector<8x1xf32> to vector<8x384xf32>
    %259 = arith.addf %256, %258 : vector<8x384xf32>
    %c0_92 = arith.constant 0 : index
    %c0_93 = arith.constant 0 : index
    %260 = vector.load %arg1[%c0_92, %c0_93] : memref<8x384xf32, #tpu.memory_space<vmem>>, vector<8x384xf32>
    %261 = arith.addf %259, %260 : vector<8x384xf32>
    %cst_94 = arith.constant 0.000000e+00 : f32
    %262 = vector.broadcast %cst_94 : f32 to vector<8x384xf32>
    %263 = arith.maximumf %261, %262 : vector<8x384xf32>
    %c0_95 = arith.constant 0 : index
    %c0_96 = arith.constant 0 : index
    %264 = vector.load %arg3[%c0_95, %c0_96] : memref<8x384xf32, #tpu.memory_space<vmem>>, vector<8x384xf32>
    tpu.vector_store %arg3[%c0_95, %c0_96], %263 {strides = array<i32>} : memref<8x384xf32, #tpu.memory_space<vmem>>, vector<8x384xf32>,
    return
  }
  func.func @transform_0(%arg0: i32) -> (i32, i32) {
    %c0_i32 = arith.constant 0 : i32
    %c0_i32_0 = arith.constant 0 : i32
    return %arg0, %c0_i32 : i32, i32
  }
  func.func @transform_1(%arg0: i32) -> (i32, i32) {
    %c0_i32 = arith.constant 0 : i32
    %c0_i32_0 = arith.constant 0 : i32
    %c0_i32_1 = arith.constant 0 : i32
    return %c0_i32, %c0_i32_0 : i32, i32
  }
  func.func @transform_2(%arg0: i32) -> (i32, i32) {
    %c0_i32 = arith.constant 0 : i32
    %c0_i32_0 = arith.constant 0 : i32
    return %arg0, %c0_i32 : i32, i32
  }
}

</mosaic_0001>

<llo_original>
// kernel: tpu_custom_call.1
$region0: #{tpu_custom_call.1}
  #allocation0 [shape = 'u32[]', space=smem, size = 0x4, offset = 0x4, fixed_abs, tag = 'smem constant byte address 0x4 - core index']
  #allocation1 [shape = 'u32[144,128]{1,0:T(1,128)}', space=vmem, size = 0x12000, scoped, tag = 'internal scratch']
  %s0 = inlined_call_operand.hbm [shape: f32[8,384], index: 0, kind: input, shape index: {}]
  %s1 = inlined_call_operand.hbm [shape: f32[8,47], index: 1, kind: input, shape index: {}]
  %s2 = inlined_call_operand.hbm [shape: f32[8,384], index: 2, kind: output, shape index: {}]
  %s3 = sld [smem:[#allocation0]]
  $region26: #{tpu_custom_call.1} parent=0
    _
  %s5 = ssub.s32 1, %s3
  %s6 = scalar_select 0, %s5, %s3
  $region1: #{tpu_custom_call.1} parent=0
    #allocation2 [shape = 'u8[12288]{0}', space=vmem, size = 0x3000, scoped, tag = 'input window, operand 0, single buffered']
    #allocation3 [shape = 's32[1]{0}', space=sflag, size = 0x4, scoped, tag = 'scoped memory for tpu_custom_call.1']
    #allocation4 [shape = 's32[1]{0}', space=sflag, size = 0x4, scoped, tag = 'scoped memory for tpu_custom_call.1']
    #allocation5 [shape = 'u8[4096]{0}', space=vmem, size = 0x1000, scoped, tag = 'input window, operand 1, single buffered']
    #allocation6 [shape = 's32[1]{0}', space=sflag, size = 0x4, scoped, tag = 'scoped memory for tpu_custom_call.1']
    #allocation7 [shape = 'u8[12288]{0}', space=vmem, size = 0x3000, scoped, tag = 'output window, operand 0, single buffered']
    %7 = vsyncpa [#allocation3], 0
    %8 = vsyncpa [#allocation6], 0
    %9 = vsyncpa [#allocation4], 0
    // Predicated region
    $region2: #{tpu_custom_call.1} parent=1 // pred_check
      _
    $region3: #{tpu_custom_call.1} parent=1 // pred_check_branch
      %11 = sbr.rel (0) target = $region5
    $region4: #{tpu_custom_call.1} parent=1 // pred_region
      %s13 = ssub.s32 384, 384
      %14 = vsyncadd [#allocation3], %s13
      %s16 = sshll.u32 [#allocation2], 4
      %s17 = int_to_ptr.vmem [resolvable:$true] %s16
      %19 = dma.hbm_to_vmem [thread:$0]  %s0, 384, %s17, [#allocation3]
    $region5: #{tpu_custom_call.1} parent=1 // pred_fallthru
      _
    // Predicated region
    $region6: #{tpu_custom_call.1} parent=1 // pred_check
      _
    $region7: #{tpu_custom_call.1} parent=1 // pred_check_branch
      %21 = sbr.rel (0) target = $region9
    $region8: #{tpu_custom_call.1} parent=1 // pred_region
      %s23 = ssub.s32 128, 128
      %24 = vsyncadd [#allocation6], %s23
      %s26 = sshll.u32 [#allocation5], 4
      %s27 = int_to_ptr.vmem [resolvable:$true] %s26
      %29 = dma.hbm_to_vmem [thread:$0]  %s1, 128, %s27, [#allocation6]
    $region9: #{tpu_custom_call.1} parent=1 // pred_fallthru
      _
    // Predicated region
    $region10: #{tpu_custom_call.1} parent=1 // pred_check
      _
    $region11: #{tpu_custom_call.1} parent=1 // pred_check_branch
      %31 = sbr.rel (0) target = $region13
    $region12: #{tpu_custom_call.1} parent=1 // pred_region
      %32 = dma.done [#allocation3], 384
    $region13: #{tpu_custom_call.1} parent=1 // pred_fallthru
      _
    // Predicated region
    $region14: #{tpu_custom_call.1} parent=1 // pred_check
      _
    $region15: #{tpu_custom_call.1} parent=1 // pred_check_branch
      %34 = sbr.rel (0) target = $region17
    $region16: #{tpu_custom_call.1} parent=1 // pred_region
      %35 = dma.done [#allocation6], 128
    $region17: #{tpu_custom_call.1} parent=1 // pred_fallthru
      _
    %v36 = vlaneseq
    %v37 = vand.u32 %v36, 127
    %v38 = vadd.s32 %v37, 128
    %v39 = vadd.s32 %v37, 256
    %v40 = vcvt.s32.f32 %v37
    %v41 = vcvt.s32.f32 %v38
    %v42 = vcvt.s32.f32 %v39
    %v43 = vadd.f32 %v40, 0.5
    %v44 = vadd.f32 %v41, 0.5
    %v45 = vadd.f32 %v42, 0.5
    %v46 = vmul.f32 %v43, 0.055555556
    %v47 = vmul.f32 %v44, 0.055555556
    %v48 = vmul.f32 %v45, 0.055555556
    %v49 = vfloor.f32 %v46
    %v50 = vfloor.f32 %v47
    %v51 = vfloor.f32 %v48
    %v52 = vmul.f32 %v49, 18.0
    %v53 = vmul.f32 %v50, 18.0
    %v54 = vmul.f32 %v51, 18.0
    %v55 = vsub.f32 %v40, %v52
    %v56 = vsub.f32 %v41, %v53
    %v57 = vsub.f32 %v42, %v54
    %vm58 = vcmp.ge.f32.partialorder %v49, 1.0
    %vm59 = vcmp.ge.f32.partialorder %v50, 1.0
    %vm60 = vcmp.ge.f32.partialorder %v51, 1.0
    %vm61 = vcmp.le.f32.partialorder %v49, 16.0
    %vm62 = vcmp.le.f32.partialorder %v50, 16.0
    %vm63 = vcmp.le.f32.partialorder %v51, 16.0
    %vm64 = vmand %vm58, %vm61
    %vm65 = vmand %vm59, %vm62
    %vm66 = vmand %vm60, %vm63
    %vm67 = vcmp.ge.f32.partialorder %v55, 1.0
    %vm68 = vcmp.ge.f32.partialorder %v56, 1.0
    %vm69 = vcmp.ge.f32.partialorder %v57, 1.0
    %vm70 = vmand %vm64, %vm67
    %vm71 = vmand %vm65, %vm68
    %vm72 = vmand %vm66, %vm69
    %vm73 = vcmp.le.f32.partialorder %v55, 16.0
    %vm74 = vcmp.le.f32.partialorder %v56, 16.0
    %vm75 = vcmp.le.f32.partialorder %v57, 16.0
    %vm76 = vmand %vm70, %vm73
    %vm77 = vmand %vm71, %vm74
    %vm78 = vmand %vm72, %vm75
    %v79 = vsel %vm76, 1.0, 0.0
    %v80 = vsel %vm77, 1.0, 0.0
    %v81 = vsel %vm78, 1.0, 0.0
    %v82 = vld [vmem:[#allocation2] sm:$0xff]
    %v83 = vld [vmem:[#allocation2 + $0x8] sm:$0xff]
    %v84 = vld [vmem:[#allocation2 + $0x10] sm:$0xff]
    %85 = vrot.lane.b32.xlu0 %v82, 19
    %v86 = vpop.permute.xlu0 %85
    %87 = vrot.lane.b32.xlu0 %v83, 19
    %v88 = vpop.permute.xlu0 %87
    %89 = vrot.lane.b32.xlu0 %v84, 19
    %v90 = vpop.permute.xlu0 %89
    %vm91 = vcmp.lt.s32.totalorder %v37, 19
    %v92 = vsel %vm91, %v88, %v90
    %v93 = vsel %vm91, %v86, %v88
    %v94 = vsel %vm91, %v90, %v86
    %v95 = vld [vmem:[#allocation5] sm:$0xff]
    %97 = vset.pattern.permute.xlu0 0
    %98 = vperm.xlu0 %97, %v95
    %v99 = vpop.permute.xlu0 %98
    %v101 = vmul.f32 %v99, %v94
    %v102 = vmul.f32 %v99, %v93
    %v103 = vmul.f32 %v99, %v92
    %v104 = vadd.f32 %v101, 0.0
    %v105 = vadd.f32 %v102, 0.0
    %v106 = vadd.f32 %v103, 0.0
    %v107 = vrot.slane %v94, 2
    %v108 = vrot.slane %v93, 2
    %v109 = vrot.slane %v92, 2
    %110 = vset.pattern.permute.xlu0 1
    %111 = vperm.xlu0 %110, %v95
    %v112 = vpop.permute.xlu0 %111
    %v114 = vmul.f32 %v112, %v107
    %v115 = vmul.f32 %v112, %v108
    %v116 = vmul.f32 %v112, %v109
    %v117 = vadd.f32 %v104, %v114
    %v118 = vadd.f32 %v105, %v115
    %v119 = vadd.f32 %v106, %v116
    %v120 = vrot.slane %v94, 4
    %v121 = vrot.slane %v93, 4
    %v122 = vrot.slane %v92, 4
    %123 = vset.pattern.permute.xlu0 2
    %124 = vperm.xlu0 %123, %v95
    %v125 = vpop.permute.xlu0 %124
    %v127 = vmul.f32 %v125, %v120
    %v128 = vmul.f32 %v125, %v121
    %v129 = vmul.f32 %v125, %v122
    %v130 = vadd.f32 %v117, %v127
    %v131 = vadd.f32 %v118, %v128
    %v132 = vadd.f32 %v119, %v129
    %v133 = vrot.slane %v94, 6
    %v134 = vrot.slane %v93, 6
    %v135 = vrot.slane %v92, 6
    %136 = vset.pattern.permute.xlu0 3
    %137 = vperm.xlu0 %136, %v95
    %v138 = vpop.permute.xlu0 %137
    %v140 = vmul.f32 %v138, %v133
    %v141 = vmul.f32 %v138, %v134
    %v142 = vmul.f32 %v138, %v135
    %v143 = vadd.f32 %v130, %v140
    %v144 = vadd.f32 %v131, %v141
    %v145 = vadd.f32 %v132, %v142
    %146 = vrot.lane.b32.xlu0 %v82, 18
    %v147 = vpop.permute.xlu0 %146
    %148 = vrot.lane.b32.xlu0 %v83, 18
    %v149 = vpop.permute.xlu0 %148
    %150 = vrot.lane.b32.xlu0 %v84, 18
    %v151 = vpop.permute.xlu0 %150
    %vm152 = vcmp.lt.s32.totalorder %v37, 18
    %v153 = vsel %vm152, %v149, %v151
    %v154 = vsel %vm152, %v147, %v149
    %v155 = vsel %vm152, %v151, %v147
    %156 = vset.pattern.permute.xlu0 4
    %157 = vperm.xlu0 %156, %v95
    %v158 = vpop.permute.xlu0 %157
    %v160 = vmul.f32 %v158, %v155
    %v161 = vmul.f32 %v158, %v154
    %v162 = vmul.f32 %v158, %v153
    %v163 = vadd.f32 %v143, %v160
    %v164 = vadd.f32 %v144, %v161
    %v165 = vadd.f32 %v145, %v162
    %v166 = vrot.slane %v155, 2
    %v167 = vrot.slane %v154, 2
    %v168 = vrot.slane %v153, 2
    %169 = vset.pattern.permute.xlu0 5
    %170 = vperm.xlu0 %169, %v95
    %v171 = vpop.permute.xlu0 %170
    %v173 = vmul.f32 %v171, %v166
    %v174 = vmul.f32 %v171, %v167
    %v175 = vmul.f32 %v171, %v168
    %v176 = vadd.f32 %v163, %v173
    %v177 = vadd.f32 %v164, %v174
    %v178 = vadd.f32 %v165, %v175
    %v179 = vrot.slane %v155, 4
    %v180 = vrot.slane %v154, 4
    %v181 = vrot.slane %v153, 4
    %182 = vset.pattern.permute.xlu0 6
    %183 = vperm.xlu0 %182, %v95
    %v184 = vpop.permute.xlu0 %183
    %v186 = vmul.f32 %v184, %v179
    %v187 = vmul.f32 %v184, %v180
    %v188 = vmul.f32 %v184, %v181
    %v189 = vadd.f32 %v176, %v186
    %v190 = vadd.f32 %v177, %v187
    %v191 = vadd.f32 %v178, %v188
    %v192 = vrot.slane %v155, 6
    %v193 = vrot.slane %v154, 6
    %v194 = vrot.slane %v153, 6
    %195 = vset.pattern.permute.xlu0 7
    %196 = vperm.xlu0 %195, %v95
    %v197 = vpop.permute.xlu0 %196
    %v199 = vmul.f32 %v197, %v192
    %v200 = vmul.f32 %v197, %v193
    %v201 = vmul.f32 %v197, %v194
    %v202 = vadd.f32 %v189, %v199
    %v203 = vadd.f32 %v190, %v200
    %v204 = vadd.f32 %v191, %v201
    %205 = vrot.lane.b32.xlu0 %v82, 17
    %v206 = vpop.permute.xlu0 %205
    %207 = vrot.lane.b32.xlu0 %v83, 17
    %v208 = vpop.permute.xlu0 %207
    %209 = vrot.lane.b32.xlu0 %v84, 17
    %v210 = vpop.permute.xlu0 %209
    %vm211 = vcmp.lt.s32.totalorder %v37, 17
    %v212 = vsel %vm211, %v208, %v210
    %v213 = vsel %vm211, %v206, %v208
    %v214 = vsel %vm211, %v210, %v206
    %215 = vset.pattern.permute.xlu0 8
    %216 = vperm.xlu0 %215, %v95
    %v217 = vpop.permute.xlu0 %216
    %v219 = vmul.f32 %v217, %v214
    %v220 = vmul.f32 %v217, %v213
    %v221 = vmul.f32 %v217, %v212
    %v222 = vadd.f32 %v202, %v219
    %v223 = vadd.f32 %v203, %v220
    %v224 = vadd.f32 %v204, %v221
    %v225 = vrot.slane %v214, 2
    %v226 = vrot.slane %v213, 2
    %v227 = vrot.slane %v212, 2
    %228 = vset.pattern.permute.xlu0 9
    %229 = vperm.xlu0 %228, %v95
    %v230 = vpop.permute.xlu0 %229
    %v232 = vmul.f32 %v230, %v225
    %v233 = vmul.f32 %v230, %v226
    %v234 = vmul.f32 %v230, %v227
    %v235 = vadd.f32 %v222, %v232
    %v236 = vadd.f32 %v223, %v233
    %v237 = vadd.f32 %v224, %v234
    %v238 = vrot.slane %v214, 4
    %v239 = vrot.slane %v213, 4
    %v240 = vrot.slane %v212, 4
    %241 = vset.pattern.permute.xlu0 10
    %242 = vperm.xlu0 %241, %v95
    %v243 = vpop.permute.xlu0 %242
    %v245 = vmul.f32 %v243, %v238
    %v246 = vmul.f32 %v243, %v239
    %v247 = vmul.f32 %v243, %v240
    %v248 = vadd.f32 %v235, %v245
    %v249 = vadd.f32 %v236, %v246
    %v250 = vadd.f32 %v237, %v247
    %v251 = vrot.slane %v214, 6
    %v252 = vrot.slane %v213, 6
    %v253 = vrot.slane %v212, 6
    %254 = vset.pattern.permute.xlu0 11
    %255 = vperm.xlu0 %254, %v95
    %v256 = vpop.permute.xlu0 %255
    %v258 = vmul.f32 %v256, %v251
    %v259 = vmul.f32 %v256, %v252
    %v260 = vmul.f32 %v256, %v253
    %v261 = vadd.f32 %v248, %v258
    %v262 = vadd.f32 %v249, %v259
    %v263 = vadd.f32 %v250, %v260
    %264 = vrot.lane.b32.xlu0 %v82, 1
    %v265 = vpop.permute.xlu0 %264
    %266 = vrot.lane.b32.xlu0 %v83, 1
    %v267 = vpop.permute.xlu0 %266
    %268 = vrot.lane.b32.xlu0 %v84, 1
    %v269 = vpop.permute.xlu0 %268
    %vm270 = vcmp.lt.s32.totalorder %v37, 1
    %v271 = vsel %vm270, %v267, %v269
    %v272 = vsel %vm270, %v265, %v267
    %v273 = vsel %vm270, %v269, %v265
    %274 = vset.pattern.permute.xlu0 12
    %275 = vperm.xlu0 %274, %v95
    %v276 = vpop.permute.xlu0 %275
    %v278 = vmul.f32 %v276, %v273
    %v279 = vmul.f32 %v276, %v272
    %v280 = vmul.f32 %v276, %v271
    %v281 = vadd.f32 %v261, %v278
    %v282 = vadd.f32 %v262, %v279
    %v283 = vadd.f32 %v263, %v280
    %v284 = vrot.slane %v273, 2
    %v285 = vrot.slane %v272, 2
    %v286 = vrot.slane %v271, 2
    %287 = vset.pattern.permute.xlu0 13
    %288 = vperm.xlu0 %287, %v95
    %v289 = vpop.permute.xlu0 %288
    %v291 = vmul.f32 %v289, %v284
    %v292 = vmul.f32 %v289, %v285
    %v293 = vmul.f32 %v289, %v286
    %v294 = vadd.f32 %v281, %v291
    %v295 = vadd.f32 %v282, %v292
    %v296 = vadd.f32 %v283, %v293
    %v297 = vrot.slane %v273, 4
    %v298 = vrot.slane %v272, 4
    %v299 = vrot.slane %v271, 4
    %300 = vset.pattern.permute.xlu0 14
    %301 = vperm.xlu0 %300, %v95
    %v302 = vpop.permute.xlu0 %301
    %v304 = vmul.f32 %v302, %v297
    %v305 = vmul.f32 %v302, %v298
    %v306 = vmul.f32 %v302, %v299
    %v307 = vadd.f32 %v294, %v304
    %v308 = vadd.f32 %v295, %v305
    %v309 = vadd.f32 %v296, %v306
    %v310 = vrot.slane %v273, 6
    %v311 = vrot.slane %v272, 6
    %v312 = vrot.slane %v271, 6
    %313 = vset.pattern.permute.xlu0 15
    %314 = vperm.xlu0 %313, %v95
    %v315 = vpop.permute.xlu0 %314
    %v317 = vmul.f32 %v315, %v310
    %v318 = vmul.f32 %v315, %v311
    %v319 = vmul.f32 %v315, %v312
    %v320 = vadd.f32 %v307, %v317
    %v321 = vadd.f32 %v308, %v318
    %v322 = vadd.f32 %v309, %v319
    %323 = vset.pattern.permute.xlu0 16
    %324 = vperm.xlu0 %323, %v95
    %v325 = vpop.permute.xlu0 %324
    %v327 = vmul.f32 %v325, %v82
    %v328 = vmul.f32 %v325, %v83
    %v329 = vmul.f32 %v325, %v84
    %v330 = vadd.f32 %v320, %v327
    %v331 = vadd.f32 %v321, %v328
    %v332 = vadd.f32 %v322, %v329
    %v333 = vrot.slane %v82, 2
    %v334 = vrot.slane %v83, 2
    %v335 = vrot.slane %v84, 2
    %336 = vset.pattern.permute.xlu0 17
    %337 = vperm.xlu0 %336, %v95
    %v338 = vpop.permute.xlu0 %337
    %v340 = vmul.f32 %v338, %v333
    %v341 = vmul.f32 %v338, %v334
    %v342 = vmul.f32 %v338, %v335
    %v343 = vadd.f32 %v330, %v340
    %v344 = vadd.f32 %v331, %v341
    %v345 = vadd.f32 %v332, %v342
    %v346 = vrot.slane %v82, 4
    %v347 = vrot.slane %v83, 4
    %v348 = vrot.slane %v84, 4
    %349 = vset.pattern.permute.xlu0 18
    %350 = vperm.xlu0 %349, %v95
    %v351 = vpop.permute.xlu0 %350
    %v353 = vmul.f32 %v351, %v346
    %v354 = vmul.f32 %v351, %v347
    %v355 = vmul.f32 %v351, %v348
    %v356 = vadd.f32 %v343, %v353
    %v357 = vadd.f32 %v344, %v354
    %v358 = vadd.f32 %v345, %v355
    %v359 = vrot.slane %v82, 6
    %v360 = vrot.slane %v83, 6
    %v361 = vrot.slane %v84, 6
    %362 = vset.pattern.permute.xlu0 19
    %363 = vperm.xlu0 %362, %v95
    %v364 = vpop.permute.xlu0 %363
    %v366 = vmul.f32 %v364, %v359
    %v367 = vmul.f32 %v364, %v360
    %v368 = vmul.f32 %v364, %v361
    %v369 = vadd.f32 %v356, %v366
    %v370 = vadd.f32 %v357, %v367
    %v371 = vadd.f32 %v358, %v368
    %372 = vrot.lane.b32.xlu0 %v82, 127
    %v373 = vpop.permute.xlu0 %372
    %374 = vrot.lane.b32.xlu0 %v83, 127
    %v375 = vpop.permute.xlu0 %374
    %376 = vrot.lane.b32.xlu0 %v84, 127
    %v377 = vpop.permute.xlu0 %376
    %vm378 = vcmp.lt.s32.totalorder %v37, 127
    %v379 = vsel %vm378, %v375, %v377
    %v380 = vsel %vm378, %v373, %v375
    %v381 = vsel %vm378, %v377, %v373
    %382 = vset.pattern.permute.xlu0 20
    %383 = vperm.xlu0 %382, %v95
    %v384 = vpop.permute.xlu0 %383
    %v386 = vmul.f32 %v384, %v380
    %v387 = vmul.f32 %v384, %v379
    %v388 = vmul.f32 %v384, %v381
    %v389 = vadd.f32 %v369, %v386
    %v390 = vadd.f32 %v370, %v387
    %v391 = vadd.f32 %v371, %v388
    %v392 = vrot.slane %v380, 2
    %v393 = vrot.slane %v379, 2
    %v394 = vrot.slane %v381, 2
    %395 = vset.pattern.permute.xlu0 21
    %396 = vperm.xlu0 %395, %v95
    %v397 = vpop.permute.xlu0 %396
    %v399 = vmul.f32 %v397, %v392
    %v400 = vmul.f32 %v397, %v393
    %v401 = vmul.f32 %v397, %v394
    %v402 = vadd.f32 %v389, %v399
    %v403 = vadd.f32 %v390, %v400
    %v404 = vadd.f32 %v391, %v401
    %v405 = vrot.slane %v380, 4
    %v406 = vrot.slane %v379, 4
    %v407 = vrot.slane %v381, 4
    %408 = vset.pattern.permute.xlu0 22
    %409 = vperm.xlu0 %408, %v95
    %v410 = vpop.permute.xlu0 %409
    %v412 = vmul.f32 %v410, %v405
    %v413 = vmul.f32 %v410, %v406
    %v414 = vmul.f32 %v410, %v407
    %v415 = vadd.f32 %v402, %v412
    %v416 = vadd.f32 %v403, %v413
    %v417 = vadd.f32 %v404, %v414
    %v418 = vrot.slane %v380, 6
    %v419 = vrot.slane %v379, 6
    %v420 = vrot.slane %v381, 6
    %421 = vset.pattern.permute.xlu0 23
    %422 = vperm.xlu0 %421, %v95
    %v423 = vpop.permute.xlu0 %422
    %v425 = vmul.f32 %v423, %v418
    %v426 = vmul.f32 %v423, %v419
    %v427 = vmul.f32 %v423, %v420
    %v428 = vadd.f32 %v415, %v425
    %v429 = vadd.f32 %v416, %v426
    %v430 = vadd.f32 %v417, %v427
    %431 = vrot.lane.b32.xlu0 %v82, 111
    %v432 = vpop.permute.xlu0 %431
    %433 = vrot.lane.b32.xlu0 %v83, 111
    %v434 = vpop.permute.xlu0 %433
    %435 = vrot.lane.b32.xlu0 %v84, 111
    %v436 = vpop.permute.xlu0 %435
    %vm437 = vcmp.lt.s32.totalorder %v37, 111
    %v438 = vsel %vm437, %v434, %v436
    %v439 = vsel %vm437, %v432, %v434
    %v440 = vsel %vm437, %v436, %v432
    %441 = vset.pattern.permute.xlu0 24
    %442 = vperm.xlu0 %441, %v95
    %v443 = vpop.permute.xlu0 %442
    %v445 = vmul.f32 %v443, %v439
    %v446 = vmul.f32 %v443, %v438
    %v447 = vmul.f32 %v443, %v440
    %v448 = vadd.f32 %v428, %v445
    %v449 = vadd.f32 %v429, %v446
    %v450 = vadd.f32 %v430, %v447
    %v451 = vrot.slane %v439, 2
    %v452 = vrot.slane %v438, 2
    %v453 = vrot.slane %v440, 2
    %454 = vset.pattern.permute.xlu0 25
    %455 = vperm.xlu0 %454, %v95
    %v456 = vpop.permute.xlu0 %455
    %v458 = vmul.f32 %v456, %v451
    %v459 = vmul.f32 %v456, %v452
    %v460 = vmul.f32 %v456, %v453
    %v461 = vadd.f32 %v448, %v458
    %v462 = vadd.f32 %v449, %v459
    %v463 = vadd.f32 %v450, %v460
    %v464 = vrot.slane %v439, 4
    %v465 = vrot.slane %v438, 4
    %v466 = vrot.slane %v440, 4
    %467 = vset.pattern.permute.xlu0 26
    %468 = vperm.xlu0 %467, %v95
    %v469 = vpop.permute.xlu0 %468
    %v471 = vmul.f32 %v469, %v464
    %v472 = vmul.f32 %v469, %v465
    %v473 = vmul.f32 %v469, %v466
    %v474 = vadd.f32 %v461, %v471
    %v475 = vadd.f32 %v462, %v472
    %v476 = vadd.f32 %v463, %v473
    %v477 = vrot.slane %v439, 6
    %v478 = vrot.slane %v438, 6
    %v479 = vrot.slane %v440, 6
    %480 = vset.pattern.permute.xlu0 27
    %481 = vperm.xlu0 %480, %v95
    %v482 = vpop.permute.xlu0 %481
    %v484 = vmul.f32 %v482, %v477
    %v485 = vmul.f32 %v482, %v478
    %v486 = vmul.f32 %v482, %v479
    %v487 = vadd.f32 %v474, %v484
    %v488 = vadd.f32 %v475, %v485
    %v489 = vadd.f32 %v476, %v486
    %490 = vrot.lane.b32.xlu0 %v82, 110
    %v491 = vpop.permute.xlu0 %490
    %492 = vrot.lane.b32.xlu0 %v83, 110
    %v493 = vpop.permute.xlu0 %492
    %494 = vrot.lane.b32.xlu0 %v84, 110
    %v495 = vpop.permute.xlu0 %494
    %vm496 = vcmp.lt.s32.totalorder %v37, 110
    %v497 = vsel %vm496, %v493, %v495
    %v498 = vsel %vm496, %v491, %v493
    %v499 = vsel %vm496, %v495, %v491
    %500 = vset.pattern.permute.xlu0 28
    %501 = vperm.xlu0 %500, %v95
    %v502 = vpop.permute.xlu0 %501
    %v504 = vmul.f32 %v502, %v498
    %v505 = vmul.f32 %v502, %v497
    %v506 = vmul.f32 %v502, %v499
    %v507 = vadd.f32 %v487, %v504
    %v508 = vadd.f32 %v488, %v505
    %v509 = vadd.f32 %v489, %v506
    %v510 = vrot.slane %v498, 2
    %v511 = vrot.slane %v497, 2
    %v512 = vrot.slane %v499, 2
    %513 = vset.pattern.permute.xlu0 29
    %514 = vperm.xlu0 %513, %v95
    %v515 = vpop.permute.xlu0 %514
    %v517 = vmul.f32 %v515, %v510
    %v518 = vmul.f32 %v515, %v511
    %v519 = vmul.f32 %v515, %v512
    %v520 = vadd.f32 %v507, %v517
    %v521 = vadd.f32 %v508, %v518
    %v522 = vadd.f32 %v509, %v519
    %v523 = vrot.slane %v498, 4
    %v524 = vrot.slane %v497, 4
    %v525 = vrot.slane %v499, 4
    %526 = vset.pattern.permute.xlu0 30
    %527 = vperm.xlu0 %526, %v95
    %v528 = vpop.permute.xlu0 %527
    %v530 = vmul.f32 %v528, %v523
    %v531 = vmul.f32 %v528, %v524
    %v532 = vmul.f32 %v528, %v525
    %v533 = vadd.f32 %v520, %v530
    %v534 = vadd.f32 %v521, %v531
    %v535 = vadd.f32 %v522, %v532
    %v536 = vrot.slane %v498, 6
    %v537 = vrot.slane %v497, 6
    %v538 = vrot.slane %v499, 6
    %539 = vset.pattern.permute.xlu0 31
    %540 = vperm.xlu0 %539, %v95
    %v541 = vpop.permute.xlu0 %540
    %v543 = vmul.f32 %v541, %v536
    %v544 = vmul.f32 %v541, %v537
    %v545 = vmul.f32 %v541, %v538
    %v546 = vadd.f32 %v533, %v543
    %v547 = vadd.f32 %v534, %v544
    %v548 = vadd.f32 %v535, %v545
    %549 = vrot.lane.b32.xlu0 %v82, 109
    %v550 = vpop.permute.xlu0 %549
    %551 = vrot.lane.b32.xlu0 %v83, 109
    %v552 = vpop.permute.xlu0 %551
    %553 = vrot.lane.b32.xlu0 %v84, 109
    %v554 = vpop.permute.xlu0 %553
    %vm555 = vcmp.lt.s32.totalorder %v37, 109
    %v556 = vsel %vm555, %v552, %v554
    %v557 = vsel %vm555, %v550, %v552
    %v558 = vsel %vm555, %v554, %v550
    %559 = vset.pattern.permute.xlu0 32
    %560 = vperm.xlu0 %559, %v95
    %v561 = vpop.permute.xlu0 %560
    %v563 = vmul.f32 %v561, %v557
    %v564 = vmul.f32 %v561, %v556
    %v565 = vmul.f32 %v561, %v558
    %v566 = vadd.f32 %v546, %v563
    %v567 = vadd.f32 %v547, %v564
    %v568 = vadd.f32 %v548, %v565
    %v569 = vrot.slane %v557, 2
    %v570 = vrot.slane %v556, 2
    %v571 = vrot.slane %v558, 2
    %572 = vset.pattern.permute.xlu0 33
    %573 = vperm.xlu0 %572, %v95
    %v574 = vpop.permute.xlu0 %573
    %v576 = vmul.f32 %v574, %v569
    %v577 = vmul.f32 %v574, %v570
    %v578 = vmul.f32 %v574, %v571
    %v579 = vadd.f32 %v566, %v576
    %v580 = vadd.f32 %v567, %v577
    %v581 = vadd.f32 %v568, %v578
    %v582 = vrot.slane %v557, 4
    %v583 = vrot.slane %v556, 4
    %v584 = vrot.slane %v558, 4
    %585 = vset.pattern.permute.xlu0 34
    %586 = vperm.xlu0 %585, %v95
    %v587 = vpop.permute.xlu0 %586
    %v589 = vmul.f32 %v587, %v582
    %v590 = vmul.f32 %v587, %v583
    %v591 = vmul.f32 %v587, %v584
    %v592 = vadd.f32 %v579, %v589
    %v593 = vadd.f32 %v580, %v590
    %v594 = vadd.f32 %v581, %v591
    %v595 = vrot.slane %v557, 6
    %v596 = vrot.slane %v556, 6
    %v597 = vrot.slane %v558, 6
    %598 = vset.pattern.permute.xlu0 35
    %599 = vperm.xlu0 %598, %v95
    %v600 = vpop.permute.xlu0 %599
    %v602 = vmul.f32 %v600, %v595
    %v603 = vmul.f32 %v600, %v596
    %v604 = vmul.f32 %v600, %v597
    %v605 = vadd.f32 %v592, %v602
    %v606 = vadd.f32 %v593, %v603
    %v607 = vadd.f32 %v594, %v604
    %608 = vset.pattern.permute.xlu0 36
    %609 = vperm.xlu0 %608, %v95
    %v610 = vpop.permute.xlu0 %609
    %v612 = vadd.f32 %v605, %v610
    %v613 = vadd.f32 %v606, %v610
    %v614 = vadd.f32 %v607, %v610
    %v615 = vmax.f32 %v612, 0.0
    %v616 = vmax.f32 %v613, 0.0
    %v617 = vmax.f32 %v614, 0.0
    %v618 = vmul.f32 %v615, %v79
    %v619 = vmul.f32 %v616, %v80
    %v620 = vmul.f32 %v617, %v81
    %621 = vrot.lane.b32.xlu0 %v618, 19
    %v622 = vpop.permute.xlu0 %621
    %623 = vrot.lane.b32.xlu0 %v619, 19
    %v624 = vpop.permute.xlu0 %623
    %625 = vrot.lane.b32.xlu0 %v620, 19
    %v626 = vpop.permute.xlu0 %625
    %v627 = vsel %vm91, %v624, %v626
    %v628 = vsel %vm91, %v622, %v624
    %v629 = vsel %vm91, %v626, %v622
    %630 = vset.pattern.permute.xlu0 37
    %631 = vperm.xlu0 %630, %v95
    %v632 = vpop.permute.xlu0 %631
    %v634 = vmul.f32 %v632, %v629
    %v635 = vmul.f32 %v632, %v628
    %v636 = vmul.f32 %v632, %v627
    %v637 = vadd.f32 %v634, 0.0
    %v638 = vadd.f32 %v635, 0.0
    %v639 = vadd.f32 %v636, 0.0
    %640 = vrot.lane.b32.xlu0 %v618, 18
    %v641 = vpop.permute.xlu0 %640
    %642 = vrot.lane.b32.xlu0 %v619, 18
    %v643 = vpop.permute.xlu0 %642
    %644 = vrot.lane.b32.xlu0 %v620, 18
    %v645 = vpop.permute.xlu0 %644
    %v646 = vsel %vm152, %v643, %v645
    %v647 = vsel %vm152, %v641, %v643
    %v648 = vsel %vm152, %v645, %v641
    %649 = vset.pattern.permute.xlu0 38
    %650 = vperm.xlu0 %649, %v95
    %v651 = vpop.permute.xlu0 %650
    %v653 = vmul.f32 %v651, %v648
    %v654 = vmul.f32 %v651, %v647
    %v655 = vmul.f32 %v651, %v646
    %v656 = vadd.f32 %v637, %v653
    %v657 = vadd.f32 %v638, %v654
    %v658 = vadd.f32 %v639, %v655
    %659 = vrot.lane.b32.xlu0 %v618, 17
    %v660 = vpop.permute.xlu0 %659
    %661 = vrot.lane.b32.xlu0 %v619, 17
    %v662 = vpop.permute.xlu0 %661
    %663 = vrot.lane.b32.xlu0 %v620, 17
    %v664 = vpop.permute.xlu0 %663
    %v665 = vsel %vm211, %v662, %v664
    %v666 = vsel %vm211, %v660, %v662
    %v667 = vsel %vm211, %v664, %v660
    %668 = vset.pattern.permute.xlu0 39
    %669 = vperm.xlu0 %668, %v95
    %v670 = vpop.permute.xlu0 %669
    %v672 = vmul.f32 %v670, %v667
    %v673 = vmul.f32 %v670, %v666
    %v674 = vmul.f32 %v670, %v665
    %v675 = vadd.f32 %v656, %v672
    %v676 = vadd.f32 %v657, %v673
    %v677 = vadd.f32 %v658, %v674
    %678 = vrot.lane.b32.xlu0 %v618, 1
    %v679 = vpop.permute.xlu0 %678
    %680 = vrot.lane.b32.xlu0 %v619, 1
    %v681 = vpop.permute.xlu0 %680
    %682 = vrot.lane.b32.xlu0 %v620, 1
    %v683 = vpop.permute.xlu0 %682
    %v684 = vsel %vm270, %v681, %v683
    %v685 = vsel %vm270, %v679, %v681
    %v686 = vsel %vm270, %v683, %v679
    %687 = vset.pattern.permute.xlu0 40
    %688 = vperm.xlu0 %687, %v95
    %v689 = vpop.permute.xlu0 %688
    %v691 = vmul.f32 %v689, %v686
    %v692 = vmul.f32 %v689, %v685
    %v693 = vmul.f32 %v689, %v684
    %v694 = vadd.f32 %v675, %v691
    %v695 = vadd.f32 %v676, %v692
    %v696 = vadd.f32 %v677, %v693
    %697 = vset.pattern.permute.xlu0 41
    %698 = vperm.xlu0 %697, %v95
    %v699 = vpop.permute.xlu0 %698
    %v701 = vmul.f32 %v699, %v618
    %v702 = vmul.f32 %v699, %v619
    %v703 = vmul.f32 %v699, %v620
    %v704 = vadd.f32 %v694, %v701
    %v705 = vadd.f32 %v695, %v702
    %v706 = vadd.f32 %v696, %v703
    %707 = vrot.lane.b32.xlu0 %v618, 127
    %v708 = vpop.permute.xlu0 %707
    %709 = vrot.lane.b32.xlu0 %v619, 127
    %v710 = vpop.permute.xlu0 %709
    %711 = vrot.lane.b32.xlu0 %v620, 127
    %v712 = vpop.permute.xlu0 %711
    %v713 = vsel %vm378, %v710, %v712
    %v714 = vsel %vm378, %v708, %v710
    %v715 = vsel %vm378, %v712, %v708
    %716 = vset.pattern.permute.xlu0 42
    %717 = vperm.xlu0 %716, %v95
    %v718 = vpop.permute.xlu0 %717
    %v720 = vmul.f32 %v718, %v714
    %v721 = vmul.f32 %v718, %v713
    %v722 = vmul.f32 %v718, %v715
    %v723 = vadd.f32 %v704, %v720
    %v724 = vadd.f32 %v705, %v721
    %v725 = vadd.f32 %v706, %v722
    %726 = vrot.lane.b32.xlu0 %v618, 111
    %v727 = vpop.permute.xlu0 %726
    %728 = vrot.lane.b32.xlu0 %v619, 111
    %v729 = vpop.permute.xlu0 %728
    %730 = vrot.lane.b32.xlu0 %v620, 111
    %v731 = vpop.permute.xlu0 %730
    %v732 = vsel %vm437, %v729, %v731
    %v733 = vsel %vm437, %v727, %v729
    %v734 = vsel %vm437, %v731, %v727
    %735 = vset.pattern.permute.xlu0 43
    %736 = vperm.xlu0 %735, %v95
    %v737 = vpop.permute.xlu0 %736
    %v739 = vmul.f32 %v737, %v733
    %v740 = vmul.f32 %v737, %v732
    %v741 = vmul.f32 %v737, %v734
    %v742 = vadd.f32 %v723, %v739
    %v743 = vadd.f32 %v724, %v740
    %v744 = vadd.f32 %v725, %v741
    %745 = vrot.lane.b32.xlu0 %v618, 110
    %v746 = vpop.permute.xlu0 %745
    %747 = vrot.lane.b32.xlu0 %v619, 110
    %v748 = vpop.permute.xlu0 %747
    %749 = vrot.lane.b32.xlu0 %v620, 110
    %v750 = vpop.permute.xlu0 %749
    %v751 = vsel %vm496, %v748, %v750
    %v752 = vsel %vm496, %v746, %v748
    %v753 = vsel %vm496, %v750, %v746
    %754 = vset.pattern.permute.xlu0 44
    %755 = vperm.xlu0 %754, %v95
    %v756 = vpop.permute.xlu0 %755
    %v758 = vmul.f32 %v756, %v752
    %v759 = vmul.f32 %v756, %v751
    %v760 = vmul.f32 %v756, %v753
    %v761 = vadd.f32 %v742, %v758
    %v762 = vadd.f32 %v743, %v759
    %v763 = vadd.f32 %v744, %v760
    %764 = vrot.lane.b32.xlu0 %v618, 109
    %v765 = vpop.permute.xlu0 %764
    %766 = vrot.lane.b32.xlu0 %v619, 109
    %v767 = vpop.permute.xlu0 %766
    %768 = vrot.lane.b32.xlu0 %v620, 109
    %v769 = vpop.permute.xlu0 %768
    %v770 = vsel %vm555, %v767, %v769
    %v771 = vsel %vm555, %v765, %v767
    %v772 = vsel %vm555, %v769, %v765
    %773 = vset.pattern.permute.xlu0 45
    %774 = vperm.xlu0 %773, %v95
    %v775 = vpop.permute.xlu0 %774
    %v777 = vmul.f32 %v775, %v771
    %v778 = vmul.f32 %v775, %v770
    %v779 = vmul.f32 %v775, %v772
    %v780 = vadd.f32 %v761, %v777
    %v781 = vadd.f32 %v762, %v778
    %v782 = vadd.f32 %v763, %v779
    %783 = vset.pattern.permute.xlu0 46
    %784 = vperm.xlu0 %783, %v95
    %v785 = vpop.permute.xlu0 %784
    %v787 = vadd.f32 %v780, %v785
    %v788 = vadd.f32 %v781, %v785
    %v789 = vadd.f32 %v782, %v785
    %v790 = vadd.f32 %v787, %v82
    %v791 = vadd.f32 %v788, %v83
    %v792 = vadd.f32 %v789, %v84
    %v793 = vmax.f32 %v790, 0.0
    %v794 = vmax.f32 %v791, 0.0
    %v795 = vmax.f32 %v792, 0.0
    %796 = vst [vmem:[#allocation7] sm:$0xff] %v793
    %797 = vst [vmem:[#allocation7 + $0x8] sm:$0xff] %v794
    %798 = vst [vmem:[#allocation7 + $0x10] sm:$0xff] %v795
    // Predicated region
    $region18: #{tpu_custom_call.1} parent=1 // pred_check
      _
    $region19: #{tpu_custom_call.1} parent=1 // pred_check_branch
      %800 = sbr.rel (0) target = $region21
    $region20: #{tpu_custom_call.1} parent=1 // pred_region
      %s802 = ssub.s32 384, 384
      %803 = vsyncadd [#allocation4], %s802
      %s805 = sshll.u32 [#allocation7], 4
      %s806 = int_to_ptr.vmem [resolvable:$true] %s805
      %808 = dma.vmem_to_hbm [thread:$0]  %s806, 384, %s2, [#allocation4]
    $region21: #{tpu_custom_call.1} parent=1 // pred_fallthru
      _
    // Predicated region
    $region22: #{tpu_custom_call.1} parent=1 // pred_check
      _
    $region23: #{tpu_custom_call.1} parent=1 // pred_check_branch
      %810 = sbr.rel (0) target = $region25
    $region24: #{tpu_custom_call.1} parent=1 // pred_region
      %811 = dma.done [#allocation4], 384
    $region25: #{tpu_custom_call.1} parent=1 // pred_fallthru
      _
    %812 = vsyncpa [#allocation3], 1
    %813 = vsyncpa [#allocation6], 1
    %814 = vsyncpa [#allocation4], 1

</llo_original>
